<compile_context>
chip_gen: v7x
topology: tpu7x:2x2x1
jax: 0.10.0
libtpu: 0.0.40
codegen_flags: <defaults>
</compile_context>

<pallas_src>
import functools

import jax
import jax.numpy as jnp
from jax.experimental import pallas as pl
from jax.experimental.pallas import tpu as pltpu

LANE = 128
MIN_LOG_VAR = -14.0
# 2048x128 f32 tile = 1 MiB per input; 4 inputs x 2 pipeline buffers = 8 MiB VMEM
# (bf16 inputs halve that), comfortably under the 32 MiB scoped limit everywhere.
MAX_TILE_ROWS = 2048


# ---------------------------------------------------------------------------
# Shared elementwise KL formula (used in-kernel and for the tiny ragged tail)
# ---------------------------------------------------------------------------
def _kl_elementwise(mu1, ls1, mu2, ls2, min_log_var):
    lv1 = jnp.maximum(2.0 * ls1, min_log_var)
    lv2 = jnp.maximum(2.0 * ls2, min_log_var)
    v1 = jnp.exp(lv1)
    inv_v2 = jnp.exp(-lv2)                 # exact 1/v2: removes the f32 divide
    diff = mu1 - mu2
    return ls2 - ls1 + (v1 + diff * diff) * (0.5 * inv_v2) - 0.5


# ---------------------------------------------------------------------------
# Gaussian KL partial-sum kernel (regularizer) — HBM-bound streaming reduction
# ---------------------------------------------------------------------------
def _kl_partial_kernel(mu1_ref, ls1_ref, mu2_ref, ls2_ref, out_ref, *,
                       min_log_var: float, valid_rows):
    i = pl.program_id(0)

    # Output block is revisited for every grid step -> use it as the accumulator.
    @pl.when(i == 0)
    def _():
        out_ref[...] = jnp.zeros_like(out_ref)

    mu1 = mu1_ref[...].astype(jnp.float32)
    ls1 = ls1_ref[...].astype(jnp.float32)
    mu2 = mu2_ref[...].astype(jnp.float32)
    ls2 = ls2_ref[...].astype(jnp.float32)

    kl = _kl_elementwise(mu1, ls1, mu2, ls2, min_log_var)

    if valid_rows is not None:
        # Last tile is partial: Pallas gives no guarantee about the padded rows,
        # so mask them out explicitly (cheap VPU work, hidden under the DMA).
        tm = mu1_ref.shape[0]
        row = jax.lax.broadcasted_iota(jnp.int32, kl.shape, 0) + i * tm
        kl = jnp.where(row < valid_rows, kl, 0.0)

    # sublane-only partial reduce into the resident 128-lane output block
    out_ref[...] += jnp.sum(kl, axis=0, keepdims=True)


def gaussian_kl_partial_sums(mu1, log_sigma1, mu2, log_sigma2, *,
                             min_log_var: float = MIN_LOG_VAR,
                             max_tile_rows: int = MAX_TILE_ROWS):
    """Returns (lane_partial (1,128) f32, tail_sum scalar f32, total int).

    sum(KL) == sum(lane_partial) + tail_sum;  mean(KL) == that / total.
    No padding copies: the 128-aligned prefix goes through the Pallas kernel
    (a pure reshape when total % 128 == 0), the <128-element tail is pure JAX.
    """
    assert mu1.shape == log_sigma1.shape == mu2.shape == log_sigma2.shape
    total = mu1.size
    assert total > 0

    rows = total // LANE
    rem = total - rows * LANE

    flats = [jnp.ravel(x) for x in (mu1, log_sigma1, mu2, log_sigma2)]

    if rem:
        tails = [f[rows * LANE:].astype(jnp.float32) for f in flats]
        tail_sum = jnp.sum(_kl_elementwise(*tails, min_log_var))
    else:
        tail_sum = jnp.float32(0.0)

    if rows == 0:
        return jnp.zeros((1, LANE), jnp.float32), tail_sum, total

    if rem:
        mains = [f[: rows * LANE].reshape(rows, LANE) for f in flats]
    else:
        mains = [f.reshape(rows, LANE) for f in flats]   # zero-copy bitcast

    if rows <= max_tile_rows:
        tm = rows                      # full-dim block: always layout-legal
    else:
        tm = max_tile_rows             # multiple of 16 -> f32 and bf16 legal
    n_tiles = pl.cdiv(rows, tm)
    valid_rows = rows if rows % tm else None

    kernel = functools.partial(_kl_partial_kernel,
                               min_log_var=float(min_log_var),
                               valid_rows=valid_rows)
    in_spec = pl.BlockSpec((tm, LANE), lambda i: (i, 0))

    itemsize = jnp.dtype(mu1.dtype).itemsize
    cost = pl.CostEstimate(
        flops=14 * rows * LANE,
        transcendentals=2 * rows * LANE,
        bytes_accessed=4 * rows * LANE * itemsize + LANE * 4,
    )

    partial = pl.pallas_call(
        kernel,
        out_shape=jax.ShapeDtypeStruct((1, LANE), jnp.float32),
        grid_spec=pltpu.PrefetchScalarGridSpec(
            num_scalar_prefetch=0,
            grid=(n_tiles,),
            in_specs=[in_spec, in_spec, in_spec, in_spec],
            out_specs=pl.BlockSpec((1, LANE), lambda i: (0, 0)),
        ),
        compiler_params=pltpu.CompilerParams(
            dimension_semantics=("arbitrary",),
            vmem_limit_bytes=32 * 1024 * 1024,
        ),
        cost_estimate=cost,
    )(*mains)
    return partial, tail_sum, total


def gaussian_kl_div_loss(mu1, log_sigma1, mu2, log_sigma2, *,
                         min_log_var: float = MIN_LOG_VAR,
                         max_tile_rows: int = MAX_TILE_ROWS):
    """reduction='mean' KL(N(mu1, s1^2) || N(mu2, s2^2)) over all elements."""
    partial, tail, total = gaussian_kl_partial_sums(
        mu1, log_sigma1, mu2, log_sigma2,
        min_log_var=min_log_var, max_tile_rows=max_tile_rows)
    return (jnp.sum(partial) + tail) / jnp.float32(total)


# ---------------------------------------------------------------------------
# GenerativeLoss — auto-balancing combine (the spec module's forward)
# The same tiny kernel also absorbs the KL finalize (cross-lane sum + /N) so the
# whole forward costs a single extra dispatch on top of the streaming kernel.
# ---------------------------------------------------------------------------
def _generative_loss_kernel(loss_rec_ref, reg_vec_ref, reg_add_ref, reg_scale_ref,
                            g_rec_ref, g_reg_ref, loss_ref, new_g_rec_ref,
                            *, alpha: float, kappa: float):
    loss_rec = loss_rec_ref[...]                                        # (1,1)
    loss_reg = (jnp.sum(reg_vec_ref[...], axis=1, keepdims=True)
                + reg_add_ref[...]) * reg_scale_ref[...]                # (1,1)
    g_rec_old = g_rec_ref[...]
    g_reg = g_reg_ref[...]

    # torch: gamma_rec <- lerp(gamma_rec, sqrt(loss_rec), alpha)   (no-grad EMA)
    g_rec = g_rec_old + alpha * (jnp.sqrt(loss_rec) - g_rec_old)

    zero = jnp.zeros_like(loss_rec)
    rec = jnp.where(g_rec <= 0.0, zero, loss_rec / (g_rec * g_rec))
    reg = jnp.where(g_reg <= 0.0, zero, loss_reg / (g_reg * g_reg))

    loss_ref[...] = rec + kappa * reg
    new_g_rec_ref[...] = g_rec


def _generative_loss_call(loss_rec, reg_vec, reg_add, reg_scale,
                          gamma_rec, gamma_reg, *, alpha: float, kappa: float):
    def to11(x):
        return jnp.asarray(x, jnp.float32).reshape(1, 1)

    reg_vec = jnp.asarray(reg_vec, jnp.float32).reshape(1, -1)
    spec = pl.BlockSpec(memory_space=pltpu.MemorySpace.VMEM)
    kernel = functools.partial(_generative_loss_kernel,
                               alpha=float(alpha), kappa=float(kappa))
    loss, new_g_rec = pl.pallas_call(
        kernel,
        out_shape=(jax.ShapeDtypeStruct((1, 1), jnp.float32),
                   jax.ShapeDtypeStruct((1, 1), jnp.float32)),
        in_specs=[spec, spec, spec, spec, spec, spec],
        out_specs=(spec, spec),
    )(to11(loss_rec), reg_vec, to11(reg_add), to11(reg_scale),
      to11(gamma_rec), to11(gamma_reg))
    return loss[0, 0], new_g_rec[0, 0]


def generative_loss(loss_rec, loss_reg, gamma_rec, gamma_reg, *,
                    alpha: float = 0.01, kappa: float = 1.0):
    """Forward of GenerativeLoss (both losses already scalar). Returns (loss, new_gamma_rec).

    # TODO(synk): the in-place registered-buffer update (self.gamma_rec) has no
    # Pallas equivalent; the updated value is returned for the caller to carry.
    """
    return _generative_loss_call(loss_rec, loss_reg, 0.0, 1.0,
                                 gamma_rec, gamma_reg, alpha=alpha, kappa=kappa)


def generative_loss_with_kl(loss_rec, mu1, log_sigma1, mu2, log_sigma2,
                            gamma_rec, gamma_reg, *,
                            alpha: float = 0.01, kappa: float = 1.0,
                            min_log_var: float = MIN_LOG_VAR):
    """Fused path: loss_reg = mean Gaussian KL; its finalize (cross-lane sum + /N)
    is folded into the combine kernel -> one tiny dispatch instead of three."""
    partial, tail, total = gaussian_kl_partial_sums(
        mu1, log_sigma1, mu2, log_sigma2, min_log_var=min_log_var)
    return _generative_loss_call(loss_rec, partial, tail, 1.0 / total,
                                 gamma_rec, gamma_reg, alpha=alpha, kappa=kappa)


# ---------------------------------------------------------------------------
# Pure-JAX references
# ---------------------------------------------------------------------------
def _kl_ref(mu1, ls1, mu2, ls2, min_log_var=MIN_LOG_VAR):
    lv1 = jnp.maximum(2.0 * ls1, min_log_var)
    lv2 = jnp.maximum(2.0 * ls2, min_log_var)
    v1 = jnp.exp(lv1)
    v2 = jnp.exp(lv2)
    kl = ls2 - ls1 + (v1 + jnp.square(mu1 - mu2)) / (2.0 * v2) - 0.5
    return jnp.mean(kl)


def _generative_loss_ref(loss_rec, loss_reg, g_rec, g_reg, alpha=0.01, kappa=1.0):
    g_rec_new = g_rec + alpha * (jnp.sqrt(loss_rec) - g_rec)
    rec = jnp.where(g_rec_new <= 0.0, 0.0, loss_rec / g_rec_new ** 2)
    reg = jnp.where(g_reg <= 0.0, 0.0, loss_reg / g_reg ** 2)
    return rec + kappa * reg, g_rec_new


if __name__ == "__main__":
    key = jax.random.PRNGKey(0)
    k1, k2, k3, k4, k5, k6 = jax.random.split(key, 6)

    # small NCHW latent + reconstruction, consistent with a conv VAE
    shape = (2, 4, 16, 16)          # 2048 elements -> 128-aligned, zero-copy path
    mu1 = jax.random.normal(k1, shape, jnp.float32)
    ls1 = 0.5 * jax.random.normal(k2, shape, jnp.float32)
    mu2 = jax.random.normal(k3, shape, jnp.float32)
    ls2 = 0.5 * jax.random.normal(k4, shape, jnp.float32)
    recon = jax.random.normal(k5, shape, jnp.float32)
    target = jax.random.normal(k6, shape, jnp.float32)

    loss_rec = jnp.mean(jnp.square(recon - target))   # reconstruction MSE (plain JAX)
    gamma_rec = jnp.float32(1.0)                      # module buffers initialized to 1.0
    gamma_reg = jnp.float32(1.0)

    # fused path: KL partial sums (Pallas) -> single finalize+combine kernel
    loss, new_gamma_rec = generative_loss_with_kl(
        loss_rec, mu1, ls1, mu2, ls2, gamma_rec, gamma_reg, alpha=0.01, kappa=1.0)

    # spec-signature path: scalar KL (Pallas) then the combine kernel
    loss_reg = gaussian_kl_div_loss(mu1, ls1, mu2, ls2)
    loss2, new_gamma_rec2 = generative_loss(loss_rec, loss_reg, gamma_rec, gamma_reg,
                                            alpha=0.01, kappa=1.0)

    # ragged-tail path (total % 128 != 0): prefix via Pallas, tail via pure JAX
    mu1r = jax.random.normal(k1, (3, 343), jnp.float32)
    ls1r = 0.5 * jax.random.normal(k2, (3, 343), jnp.float32)
    mu2r = jax.random.normal(k3, (3, 343), jnp.float32)
    ls2r = 0.5 * jax.random.normal(k4, (3, 343), jnp.float32)
    kl_ragged = gaussian_kl_div_loss(mu1r, ls1r, mu2r, ls2r)

    # in-kernel row-masking path (rows % tile != 0, no padding)
    mu1m = jax.random.normal(k5, (20, 128), jnp.float32)
    ls1m = 0.5 * jax.random.normal(k6, (20, 128), jnp.float32)
    mu2m = jax.random.normal(k1, (20, 128), jnp.float32)
    ls2m = 0.5 * jax.random.normal(k2, (20, 128), jnp.float32)
    kl_masked = gaussian_kl_div_loss(mu1m, ls1m, mu2m, ls2m, max_tile_rows=8)

    # bf16 inputs (halved HBM traffic; f32 upcast happens in-kernel)
    kl_bf16 = gaussian_kl_div_loss(mu1.astype(jnp.bfloat16), ls1.astype(jnp.bfloat16),
                                   mu2.astype(jnp.bfloat16), ls2.astype(jnp.bfloat16))

    (loss, new_gamma_rec, loss2, new_gamma_rec2, loss_reg, loss_rec,
     kl_ragged, kl_masked, kl_bf16) = jax.block_until_ready(
        (loss, new_gamma_rec, loss2, new_gamma_rec2, loss_reg, loss_rec,
         kl_ragged, kl_masked, kl_bf16))

    # correctness checks against pure-JAX references
    ref_reg = _kl_ref(mu1, ls1, mu2, ls2)
    assert jnp.allclose(loss_reg, ref_reg, rtol=1e-5, atol=1e-5), (loss_reg, ref_reg)

    ref_loss, ref_gamma = _generative_loss_ref(loss_rec, ref_reg, gamma_rec, gamma_reg,
                                               alpha=0.01, kappa=1.0)
    assert jnp.allclose(loss, ref_loss, rtol=1e-5, atol=1e-5), (loss, ref_loss)
    assert jnp.allclose(new_gamma_rec, ref_gamma, rtol=1e-6, atol=1e-6)
    assert jnp.allclose(loss2, ref_loss, rtol=1e-5, atol=1e-5), (loss2, ref_loss)
    assert jnp.allclose(new_gamma_rec2, ref_gamma, rtol=1e-6, atol=1e-6)

    assert jnp.allclose(kl_ragged, _kl_ref(mu1r, ls1r, mu2r, ls2r), rtol=1e-5, atol=1e-5)
    assert jnp.allclose(kl_masked, _kl_ref(mu1m, ls1m, mu2m, ls2m), rtol=1e-5, atol=1e-5)

    bf = lambda x: x.astype(jnp.bfloat16).astype(jnp.float32)
    assert jnp.allclose(kl_bf16, _kl_ref(bf(mu1), bf(ls1), bf(mu2), bf(ls2)),
                        rtol=1e-5, atol=1e-5)

    print("KERNEL_OK")
</pallas_src>

<mosaic_0001>
module attributes {stable_mosaic.version = 11 : i64} {
  func.func @_kl_partial_kernel(%arg0: i32, %arg1: memref<16x128xf32, #tpu.memory_space<vmem>>, %arg2: memref<16x128xf32, #tpu.memory_space<vmem>>, %arg3: memref<16x128xf32, #tpu.memory_space<vmem>>, %arg4: memref<16x128xf32, #tpu.memory_space<vmem>>, %arg5: memref<1x128xf32, #tpu.memory_space<vmem>>) attributes {dimension_semantics = [#tpu.dimension_semantics<arbitrary>], iteration_bounds = array<i64: 1>, scalar_prefetch = 0 : i64, scratch_operands = 0 : i64, tpu.core_type = #tpu.core_type<tc>, window_params = [{transform_indices = @transform_0, window_bounds = array<i64: 16, 128>}, {transform_indices = @transform_1, window_bounds = array<i64: 16, 128>}, {transform_indices = @transform_2, window_bounds = array<i64: 16, 128>}, {transform_indices = @transform_3, window_bounds = array<i64: 16, 128>}, {pipeline_mode = #tpu.pipeline_mode<synchronous>, transform_indices = @transform_4, window_bounds = array<i64: 1, 128>}]} {
    %c0_i32 = arith.constant 0 : i32
    %0 = arith.cmpi eq, %arg0, %c0_i32 : i32
    %1 = arith.extui %0 : i1 to i32
    %c0_i32_0 = arith.constant 0 : i32
    %2 = arith.cmpi ne, %1, %c0_i32_0 : i32
    scf.if %2 {
      %cst_19 = arith.constant 0.000000e+00 : f32
      %34 = vector.broadcast %cst_19 : f32 to vector<1x128xf32>
      %c0_20 = arith.constant 0 : index
      %c0_21 = arith.constant 0 : index
      %35 = vector.load %arg5[%c0_20, %c0_21] : memref<1x128xf32, #tpu.memory_space<vmem>>, vector<1x128xf32>
      tpu.vector_store %arg5[%c0_20, %c0_21], %34 {strides = array<i32>} : memref<1x128xf32, #tpu.memory_space<vmem>>, vector<1x128xf32>,
    } else {
    }
    %c0 = arith.constant 0 : index
    %c0_1 = arith.constant 0 : index
    %3 = vector.load %arg1[%c0, %c0_1] : memref<16x128xf32, #tpu.memory_space<vmem>>, vector<16x128xf32>
    %c0_2 = arith.constant 0 : index
    %c0_3 = arith.constant 0 : index
    %4 = vector.load %arg2[%c0_2, %c0_3] : memref<16x128xf32, #tpu.memory_space<vmem>>, vector<16x128xf32>
    %c0_4 = arith.constant 0 : index
    %c0_5 = arith.constant 0 : index
    %5 = vector.load %arg3[%c0_4, %c0_5] : memref<16x128xf32, #tpu.memory_space<vmem>>, vector<16x128xf32>
    %c0_6 = arith.constant 0 : index
    %c0_7 = arith.constant 0 : index
    %6 = vector.load %arg4[%c0_6, %c0_7] : memref<16x128xf32, #tpu.memory_space<vmem>>, vector<16x128xf32>
    %cst = arith.constant 2.000000e+00 : f32
    %7 = vector.broadcast %cst : f32 to vector<16x128xf32>
    %8 = arith.mulf %7, %4 : vector<16x128xf32>
    %cst_8 = arith.constant -1.400000e+01 : f32
    %9 = vector.broadcast %cst_8 : f32 to vector<16x128xf32>
    %10 = arith.maximumf %8, %9 : vector<16x128xf32>
    %cst_9 = arith.constant 2.000000e+00 : f32
    %11 = vector.broadcast %cst_9 : f32 to vector<16x128xf32>
    %12 = arith.mulf %11, %6 : vector<16x128xf32>
    %cst_10 = arith.constant -1.400000e+01 : f32
    %13 = vector.broadcast %cst_10 : f32 to vector<16x128xf32>
    %14 = arith.maximumf %12, %13 : vector<16x128xf32>
    %15 = math.exp %10 : vector<16x128xf32>
    %cst_11 = arith.constant 0.000000e+00 : f32
    %16 = vector.broadcast %cst_11 : f32 to vector<16x128xf32>
    %17 = arith.subf %16, %14 : vector<16x128xf32>
    %18 = math.exp %17 : vector<16x128xf32>
    %19 = arith.subf %3, %5 : vector<16x128xf32>
    %20 = arith.subf %6, %4 : vector<16x128xf32>
    %21 = arith.mulf %19, %19 : vector<16x128xf32>
    %22 = arith.addf %15, %21 : vector<16x128xf32>
    %cst_12 = arith.constant 5.000000e-01 : f32
    %23 = vector.broadcast %cst_12 : f32 to vector<16x128xf32>
    %24 = arith.mulf %23, %18 : vector<16x128xf32>
    %25 = arith.mulf %22, %24 : vector<16x128xf32>
    %26 = arith.addf %20, %25 : vector<16x128xf32>
    %cst_13 = arith.constant 5.000000e-01 : f32
    %27 = vector.broadcast %cst_13 : f32 to vector<16x128xf32>
    %28 = arith.subf %26, %27 : vector<16x128xf32>
    %c0_14 = arith.constant 0 : index
    %c0_15 = arith.constant 0 : index
    %29 = vector.load %arg5[%c0_14, %c0_15] : memref<1x128xf32, #tpu.memory_space<vmem>>, vector<1x128xf32>
    %cst_16 = arith.constant dense<0.000000e+00> : vector<128xf32>
    %30 = vector.multi_reduction <add>, %28, %cst_16 [0] : vector<16x128xf32> to vector<128xf32>
    %31 = vector.shape_cast %30 : vector<128xf32> to vector<1x128xf32>
    %32 = arith.addf %29, %31 : vector<1x128xf32>
    %c0_17 = arith.constant 0 : index
    %c0_18 = arith.constant 0 : index
    %33 = vector.load %arg5[%c0_17, %c0_18] : memref<1x128xf32, #tpu.memory_space<vmem>>, vector<1x128xf32>
    tpu.vector_store %arg5[%c0_17, %c0_18], %32 {strides = array<i32>} : memref<1x128xf32, #tpu.memory_space<vmem>>, vector<1x128xf32>,
    return
  }
  func.func @transform_0(%arg0: i32) -> (i32, i32) {
    %c0_i32 = arith.constant 0 : i32
    %c0_i32_0 = arith.constant 0 : i32
    return %arg0, %c0_i32 : i32, i32
  }
  func.func @transform_1(%arg0: i32) -> (i32, i32) {
    %c0_i32 = arith.constant 0 : i32
    %c0_i32_0 = arith.constant 0 : i32
    return %arg0, %c0_i32 : i32, i32
  }
  func.func @transform_2(%arg0: i32) -> (i32, i32) {
    %c0_i32 = arith.constant 0 : i32
    %c0_i32_0 = arith.constant 0 : i32
    return %arg0, %c0_i32 : i32, i32
  }
  func.func @transform_3(%arg0: i32) -> (i32, i32) {
    %c0_i32 = arith.constant 0 : i32
    %c0_i32_0 = arith.constant 0 : i32
    return %arg0, %c0_i32 : i32, i32
  }
  func.func @transform_4(%arg0: i32) -> (i32, i32) {
    %c0_i32 = arith.constant 0 : i32
    %c0_i32_0 = arith.constant 0 : i32
    %c0_i32_1 = arith.constant 0 : i32
    return %c0_i32, %c0_i32_0 : i32, i32
  }
}

</mosaic_0001>

<llo_original>
// kernel: tpu_custom_call.1
$region0: #{tpu_custom_call.1}
  #allocation0 [shape = 'u32[]', space=smem, size = 0x4, offset = 0x4, fixed_abs, tag = 'smem constant byte address 0x4 - core index']
  #allocation1 [shape = 'u32[144,128]{1,0:T(1,128)}', space=vmem, size = 0x12000, scoped, tag = 'internal scratch']
  %s0 = inlined_call_operand.hbm [shape: f32[16,128], index: 0, kind: input, shape index: {}]
  %s1 = inlined_call_operand.hbm [shape: f32[16,128], index: 1, kind: input, shape index: {}]
  %s2 = inlined_call_operand.hbm [shape: f32[16,128], index: 2, kind: input, shape index: {}]
  %s3 = inlined_call_operand.hbm [shape: f32[16,128], index: 3, kind: input, shape index: {}]
  %s4 = inlined_call_operand.hbm [shape: f32[1,128], index: 4, kind: output, shape index: {}]
  %s5 = sld [smem:[#allocation0]]
  $region46: #{tpu_custom_call.1} parent=0
    _
  %s7 = ssub.s32 1, %s5
  %s8 = scalar_select 0, %s7, %s5
  $region1: #{tpu_custom_call.1} parent=0
    #allocation2 [shape = 'u8[8192]{0}', space=vmem, size = 0x2000, scoped, tag = 'input window, operand 0, single buffered']
    #allocation3 [shape = 's32[1]{0}', space=sflag, size = 0x4, scoped, tag = 'scoped memory for tpu_custom_call.1']
    #allocation4 [shape = 's32[1]{0}', space=sflag, size = 0x4, scoped, tag = 'scoped memory for tpu_custom_call.1']
    #allocation5 [shape = 'u8[8192]{0}', space=vmem, size = 0x2000, scoped, tag = 'input window, operand 1, single buffered']
    #allocation6 [shape = 's32[1]{0}', space=sflag, size = 0x4, scoped, tag = 'scoped memory for tpu_custom_call.1']
    #allocation7 [shape = 'u8[8192]{0}', space=vmem, size = 0x2000, scoped, tag = 'input window, operand 2, single buffered']
    #allocation8 [shape = 'u8[8192]{0}', space=vmem, size = 0x2000, scoped, tag = 'input window, operand 3, single buffered']
    #allocation9 [shape = 's32[1]{0}', space=sflag, size = 0x4, scoped, tag = 'scoped memory for tpu_custom_call.1']
    #allocation10 [shape = 'u8[512]{0}', space=vmem, size = 0x400, scoped, tag = 'output window, operand 0, single buffered']
    %9 = vsyncpa [#allocation3], 0
    %10 = vsyncpa [#allocation6], 0
    %11 = vsyncpa [#allocation9], 0
    %12 = vsyncpa [#allocation4], 0
    // Predicated region
    $region2: #{tpu_custom_call.1} parent=1 // pred_check
      _
    $region3: #{tpu_custom_call.1} parent=1 // pred_check_branch
      %14 = sbr.rel (0) target = $region5
    $region4: #{tpu_custom_call.1} parent=1 // pred_region
      %s16 = ssub.s32 256, 256
      %17 = vsyncadd [#allocation3], %s16
      %s18 = sshll.u32 [#allocation2], 4
      %s19 = int_to_ptr.vmem [resolvable:$true] %s18
      %24 = dma.hbm_to_vmem [thread:$0]  %s0, 256, %s19, [#allocation3], 128, 128, 8
    $region5: #{tpu_custom_call.1} parent=1 // pred_fallthru
      _
    // Predicated region
    $region6: #{tpu_custom_call.1} parent=1 // pred_check
      _
    $region7: #{tpu_custom_call.1} parent=1 // pred_check_branch
      %26 = sbr.rel (0) target = $region9
    $region8: #{tpu_custom_call.1} parent=1 // pred_region
      %s28 = ssub.s32 256, 256
      %29 = vsyncadd [#allocation6], %s28
      %s30 = sshll.u32 [#allocation5], 4
      %s31 = int_to_ptr.vmem [resolvable:$true] %s30
      %36 = dma.hbm_to_vmem [thread:$0]  %s1, 256, %s31, [#allocation6], 128, 128, 8
    $region9: #{tpu_custom_call.1} parent=1 // pred_fallthru
      _
    // Predicated region
    $region10: #{tpu_custom_call.1} parent=1 // pred_check
      _
    $region11: #{tpu_custom_call.1} parent=1 // pred_check_branch
      %38 = sbr.rel (0) target = $region13
    $region12: #{tpu_custom_call.1} parent=1 // pred_region
      %s40 = ssub.s32 256, 256
      %41 = vsyncadd [#allocation6], %s40
      %s42 = sshll.u32 [#allocation7], 4
      %s43 = int_to_ptr.vmem [resolvable:$true] %s42
      %48 = dma.hbm_to_vmem [thread:$0]  %s2, 256, %s43, [#allocation6], 128, 128, 8
    $region13: #{tpu_custom_call.1} parent=1 // pred_fallthru
      _
    // Predicated region
    $region14: #{tpu_custom_call.1} parent=1 // pred_check
      _
    $region15: #{tpu_custom_call.1} parent=1 // pred_check_branch
      %50 = sbr.rel (0) target = $region17
    $region16: #{tpu_custom_call.1} parent=1 // pred_region
      %s52 = ssub.s32 256, 256
      %53 = vsyncadd [#allocation9], %s52
      %s54 = sshll.u32 [#allocation8], 4
      %s55 = int_to_ptr.vmem [resolvable:$true] %s54
      %60 = dma.hbm_to_vmem [thread:$0]  %s3, 256, %s55, [#allocation9], 128, 128, 8
    $region17: #{tpu_custom_call.1} parent=1 // pred_fallthru
      _
    // Predicated region
    $region18: #{tpu_custom_call.1} parent=1 // pred_check
      _
    $region19: #{tpu_custom_call.1} parent=1 // pred_check_branch
      %62 = sbr.rel (0) target = $region21
    $region20: #{tpu_custom_call.1} parent=1 // pred_region
      %63 = dma.done [#allocation3], 256
    $region21: #{tpu_custom_call.1} parent=1 // pred_fallthru
      _
    // Predicated region
    $region22: #{tpu_custom_call.1} parent=1 // pred_check
      _
    $region23: #{tpu_custom_call.1} parent=1 // pred_check_branch
      %65 = sbr.rel (0) target = $region25
    $region24: #{tpu_custom_call.1} parent=1 // pred_region
      %66 = dma.done [#allocation6], 256
    $region25: #{tpu_custom_call.1} parent=1 // pred_fallthru
      _
    // Predicated region
    $region26: #{tpu_custom_call.1} parent=1 // pred_check
      _
    $region27: #{tpu_custom_call.1} parent=1 // pred_check_branch
      %68 = sbr.rel (0) target = $region29
    $region28: #{tpu_custom_call.1} parent=1 // pred_region
      %69 = dma.done [#allocation6], 256
    $region29: #{tpu_custom_call.1} parent=1 // pred_fallthru
      _
    // Predicated region
    $region30: #{tpu_custom_call.1} parent=1 // pred_check
      _
    $region31: #{tpu_custom_call.1} parent=1 // pred_check_branch
      %71 = sbr.rel (0) target = $region33
    $region32: #{tpu_custom_call.1} parent=1 // pred_region
      %72 = dma.done [#allocation9], 256
    $region33: #{tpu_custom_call.1} parent=1 // pred_fallthru
      _
    %p73 = scmp.eq.s32.totalorder 0, 0
    // Predicated region
    $region34: #{tpu_custom_call.1} parent=1 // pred_check
      %p74 = pneg %p73
    $region35: #{tpu_custom_call.1} parent=1 // pred_check_branch
      %76 = sbr.rel (%p74) target = $region37
    $region36: #{tpu_custom_call.1} parent=1 // pred_region
      %77 = vst [vmem:[#allocation10] sm:$0x1] 0.0
    $region37: #{tpu_custom_call.1} parent=1 // pred_fallthru
      _
    %v78 = vld [vmem:[#allocation2] sm:$0xff]
    %v79 = vld [vmem:[#allocation2 + $0x8] sm:$0xff]
    %v80 = vld [vmem:[#allocation5] sm:$0xff]
    %v81 = vld [vmem:[#allocation5 + $0x8] sm:$0xff]
    %v82 = vld [vmem:[#allocation7] sm:$0xff]
    %v83 = vld [vmem:[#allocation7 + $0x8] sm:$0xff]
    %v84 = vld [vmem:[#allocation8] sm:$0xff]
    %v85 = vld [vmem:[#allocation8 + $0x8] sm:$0xff]
    %v86 = vmul.f32 %v80, 2.0
    %v87 = vmul.f32 %v81, 2.0
    %v88 = vmax.f32 %v86, -14.0
    %v89 = vmax.f32 %v87, -14.0
    %v90 = vmul.f32 %v84, 2.0
    %v91 = vmul.f32 %v85, 2.0
    %v92 = vmax.f32 %v90, -14.0
    %v93 = vmax.f32 %v91, -14.0
    %v94 = vmul.f32 %v88, 1.442695
    %v95 = vpow.pop %v94
    %v96 = vmul.f32 %v89, 1.442695
    %v97 = vpow.pop %v96
    %v98 = vsub.f32 0.0, %v92
    %v99 = vsub.f32 0.0, %v93
    %v100 = vmul.f32 %v98, 1.442695
    %v101 = vpow.pop %v100
    %v102 = vmul.f32 %v99, 1.442695
    %v103 = vpow.pop %v102
    %v104 = vsub.f32 %v78, %v82
    %v105 = vsub.f32 %v79, %v83
    %v106 = vsub.f32 %v84, %v80
    %v107 = vsub.f32 %v85, %v81
    %v108 = vmul.f32 %v104, %v104
    %v109 = vmul.f32 %v105, %v105
    %v110 = vadd.f32 %v95, %v108
    %v111 = vadd.f32 %v97, %v109
    %v112 = vmul.f32 %v101, 0.5
    %v113 = vmul.f32 %v103, 0.5
    %v114 = vmul.f32 %v110, %v112
    %v115 = vmul.f32 %v111, %v113
    %v116 = vadd.f32 %v106, %v114
    %v117 = vadd.f32 %v107, %v115
    %v118 = vsub.f32 %v116, 0.5
    %v119 = vsub.f32 %v117, 0.5
    %v120 = vld [vmem:[#allocation10] sm:$0x1]
    %v121 = vadd.f32 %v118, %v119
    %v122 = vrot.slane %v121, 4
    %v123 = vadd.f32 %v121, %v122
    %v124 = vrot.slane %v123, 2
    %v125 = vadd.f32 %v123, %v124
    %v126 = vrot.slane %v125, 1
    %v127 = vadd.f32 %v125, %v126
    %v128 = vadd.f32 %v120, %v127
    %129 = vst [vmem:[#allocation10] sm:$0x1] %v128
    // Predicated region
    $region38: #{tpu_custom_call.1} parent=1 // pred_check
      _
    $region39: #{tpu_custom_call.1} parent=1 // pred_check_branch
      %131 = sbr.rel (0) target = $region41
    $region40: #{tpu_custom_call.1} parent=1 // pred_region
      %s133 = ssub.s32 16, 16
      %134 = vsyncadd [#allocation4], %s133
      %s136 = sshll.u32 [#allocation10], 4
      %s137 = int_to_ptr.vmem [resolvable:$true] %s136
      %139 = dma.vmem_to_hbm [thread:$0]  %s137, 16, %s4, [#allocation4]
    $region41: #{tpu_custom_call.1} parent=1 // pred_fallthru
      _
    // Predicated region
    $region42: #{tpu_custom_call.1} parent=1 // pred_check
      _
    $region43: #{tpu_custom_call.1} parent=1 // pred_check_branch
      %141 = sbr.rel (0) target = $region45
    $region44: #{tpu_custom_call.1} parent=1 // pred_region
      %142 = dma.done [#allocation4], 16
    $region45: #{tpu_custom_call.1} parent=1 // pred_fallthru
      _
    %143 = vsyncpa [#allocation3], 1
    %144 = vsyncpa [#allocation6], 1
    %145 = vsyncpa [#allocation9], 1
    %146 = vsyncpa [#allocation4], 1

</llo_original>
